<compile_context>
chip_gen: v6e
topology: v6e:2x2x1
jax: 0.10.0
libtpu: 0.0.40
codegen_flags: <defaults>
</compile_context>

<pallas_src>
import jax
import jax.numpy as jnp
from jax.experimental import pallas as pl
from jax.experimental.pallas import tpu as pltpu

IN, OUT = 8, 8
ROW_PACK = 16            # logical rows packed per 128-lane vreg row (16 * 8 = 128)
LANES = ROW_PACK * IN    # 128
SUBLANES = 8
MAX_TILE_R = 512         # packed rows per grid step: 512*128*4 B = 256 KiB/tile


def _round_up(n, m):
    return ((n + m - 1) // m) * m


def packed_linear_silu_kernel(x_ref, w_ref, b_ref, o_ref):
    # x_ref: (TILE_R, 128) packed rows; w_ref: (128, 128) block-diag W^T;
    # b_ref: (1, 128) tiled bias.  Everything lane-dense.
    y = jnp.dot(x_ref[...], w_ref[...], preferred_element_type=jnp.float32) + b_ref[...]
    # SiLU: sigmoid(y) * y — transcendental on the EUP slot.
    o_ref[...] = (jax.nn.sigmoid(y) * y).astype(o_ref.dtype)


def linear_silu(x, w, bias, *, min_pallas_batch=0):
    """out = sigmoid(x @ w.T + bias) * (x @ w.T + bias), shape-generic in batch."""
    bsz, in_f = x.shape
    out_f = w.shape[0]
    assert in_f == IN and out_f == OUT

    if bsz < min_pallas_batch:
        # Tiny-batch policy: Pallas launch + DMA overhead dwarfs the flops;
        # let XLA fuse linear+SiLU instead (set min_pallas_batch>=512 in prod).
        y = x @ w.T + bias
        return jax.nn.sigmoid(y) * y

    # ---- pack 16 logical rows per 128-lane row (lane-dense layout) ----------
    # Pad B so packed rows are a multiple of 8 sublanes and of the tile size.
    n_logical = _round_up(bsz, ROW_PACK * SUBLANES)        # multiple of 128
    r_packed = n_logical // ROW_PACK                       # multiple of 8
    tile_r = min(MAX_TILE_R, r_packed)
    r_pad = _round_up(r_packed, tile_r)
    n_pad_rows = r_pad * ROW_PACK

    x_pad = jnp.zeros((n_pad_rows, IN), x.dtype).at[:bsz].set(x)
    x_packed = x_pad.reshape(r_pad, LANES)                 # (R, 128)

    # Block-diagonal replication of W^T and tiled bias — built once, outside
    # the kernel, resident in VMEM across all grid steps.
    w_bd = jnp.kron(jnp.eye(ROW_PACK, dtype=w.dtype), w.T)        # (128, 128)
    b_tiled = jnp.tile(bias, ROW_PACK).reshape(1, LANES)          # (1, 128)

    grid = (r_pad // tile_r,)
    cost = pl.CostEstimate(
        flops=2 * r_pad * LANES * LANES,
        transcendentals=r_pad * LANES,
        bytes_accessed=4 * (2 * r_pad * LANES + LANES * LANES + LANES),
    )

    out_packed = pl.pallas_call(
        packed_linear_silu_kernel,
        out_shape=jax.ShapeDtypeStruct((r_pad, LANES), jnp.float32),
        grid=grid,
        in_specs=[
            pl.BlockSpec((tile_r, LANES), lambda i: (i, 0)),   # x: streamed tiles
            pl.BlockSpec((LANES, LANES), lambda i: (0, 0)),    # W_bd: resident
            pl.BlockSpec((1, LANES), lambda i: (0, 0)),        # bias: resident
        ],
        out_specs=pl.BlockSpec((tile_r, LANES), lambda i: (i, 0)),
        compiler_params=pltpu.CompilerParams(
            dimension_semantics=("parallel",),                 # shard over v7x's 2 TCs
            vmem_limit_bytes=32 * 1024 * 1024,
        ),
        cost_estimate=cost,
    )(x_packed, w_bd, b_tiled)

    return out_packed.reshape(n_pad_rows, OUT)[:bsz]


def reference(x, w, bias):
    y = x @ w.T + bias
    return jax.nn.sigmoid(y) * y


if __name__ == "__main__":
    key = jax.random.PRNGKey(0)
    kx, kw, kb = jax.random.split(key, 3)

    # Input consistent with the module: x1 = torch.randn(1, 8)
    x = jax.random.normal(kx, (1, IN), dtype=jnp.float32)

    # Deterministic Linear(8, 8) init (uniform(-1/sqrt(IN), 1/sqrt(IN)), like PyTorch default)
    bound = 1.0 / jnp.sqrt(jnp.float32(IN))
    w = jax.random.uniform(kw, (OUT, IN), dtype=jnp.float32, minval=-bound, maxval=bound)
    bias = jax.random.uniform(kb, (OUT,), dtype=jnp.float32, minval=-bound, maxval=bound)

    out = jax.block_until_ready(linear_silu(x, w, bias))
    ref = reference(x, w, bias)
    assert out.shape == (1, OUT)
    assert jnp.allclose(out, ref, atol=1e-5, rtol=1e-5)

    # Also exercise the shape-generic packed path (non-multiple-of-16 batch,
    # all 16 lane groups + padding/trim) at a still-small size.
    xb = jax.random.normal(kx, (50, IN), dtype=jnp.float32)
    outb = jax.block_until_ready(linear_silu(xb, w, bias))
    refb = reference(xb, w, bias)
    assert outb.shape == (50, OUT)
    assert jnp.allclose(outb, refb, atol=1e-5, rtol=1e-5)

    print("KERNEL_OK")
</pallas_src>

<mosaic_0001>
module attributes {stable_mosaic.version = 11 : i64} {
  func.func @packed_linear_silu_kernel(%arg0: i32, %arg1: memref<8x128xf32, #tpu.memory_space<vmem>>, %arg2: memref<128x128xf32, #tpu.memory_space<vmem>>, %arg3: memref<1x128xf32, #tpu.memory_space<vmem>>, %arg4: memref<8x128xf32, #tpu.memory_space<vmem>>) attributes {dimension_semantics = [#tpu.dimension_semantics<parallel>], iteration_bounds = array<i64: 1>, scalar_prefetch = 0 : i64, scratch_operands = 0 : i64, tpu.core_type = #tpu.core_type<tc>, window_params = [{transform_indices = @transform_0, window_bounds = array<i64: 8, 128>}, {pipeline_mode = #tpu.pipeline_mode<synchronous>, transform_indices = @transform_1, window_bounds = array<i64: 128, 128>}, {pipeline_mode = #tpu.pipeline_mode<synchronous>, transform_indices = @transform_2, window_bounds = array<i64: 1, 128>}, {transform_indices = @transform_3, window_bounds = array<i64: 8, 128>}]} {
    %c0 = arith.constant 0 : index
    %c0_0 = arith.constant 0 : index
    %0 = vector.load %arg1[%c0, %c0_0] : memref<8x128xf32, #tpu.memory_space<vmem>>, vector<8x128xf32>
    %c0_1 = arith.constant 0 : index
    %c0_2 = arith.constant 0 : index
    %1 = vector.load %arg2[%c0_1, %c0_2] : memref<128x128xf32, #tpu.memory_space<vmem>>, vector<128x128xf32>
    %cst = arith.constant dense<0.000000e+00> : vector<8x128xf32>
    %2 = tpu.matmul %0, %1, %cst {dimension_numbers = #tpu.dot_dimension_numbers<[1], [0], [0], [1], [0, 0, 1, 1], [], []>} : vector<8x128xf32>, vector<128x128xf32>, vector<8x128xf32> -> vector<8x128xf32>
    %c0_3 = arith.constant 0 : index
    %c0_4 = arith.constant 0 : index
    %3 = vector.load %arg3[%c0_3, %c0_4] : memref<1x128xf32, #tpu.memory_space<vmem>>, vector<1x128xf32>
    %4 = vector.broadcast %3 : vector<1x128xf32> to vector<8x128xf32>
    %5 = arith.addf %2, %4 : vector<8x128xf32>
    %6 = arith.negf %5 : vector<8x128xf32>
    %7 = math.exp %6 : vector<8x128xf32>
    %cst_5 = arith.constant 1.000000e+00 : f32
    %8 = vector.broadcast %cst_5 : f32 to vector<8x128xf32>
    %9 = arith.addf %8, %7 : vector<8x128xf32>
    %10 = arith.divf %8, %9 : vector<8x128xf32>
    %11 = arith.mulf %10, %5 : vector<8x128xf32>
    %c0_6 = arith.constant 0 : index
    %c0_7 = arith.constant 0 : index
    %12 = vector.load %arg4[%c0_6, %c0_7] : memref<8x128xf32, #tpu.memory_space<vmem>>, vector<8x128xf32>
    tpu.vector_store %arg4[%c0_6, %c0_7], %11 {strides = array<i32>} : memref<8x128xf32, #tpu.memory_space<vmem>>, vector<8x128xf32>,
    return
  }
  func.func @transform_0(%arg0: i32) -> (i32, i32) {
    %c0_i32 = arith.constant 0 : i32
    %c0_i32_0 = arith.constant 0 : i32
    return %arg0, %c0_i32 : i32, i32
  }
  func.func @transform_1(%arg0: i32) -> (i32, i32) {
    %c0_i32 = arith.constant 0 : i32
    %c0_i32_0 = arith.constant 0 : i32
    %c0_i32_1 = arith.constant 0 : i32
    return %c0_i32, %c0_i32_0 : i32, i32
  }
  func.func @transform_2(%arg0: i32) -> (i32, i32) {
    %c0_i32 = arith.constant 0 : i32
    %c0_i32_0 = arith.constant 0 : i32
    %c0_i32_1 = arith.constant 0 : i32
    return %c0_i32, %c0_i32_0 : i32, i32
  }
  func.func @transform_3(%arg0: i32) -> (i32, i32) {
    %c0_i32 = arith.constant 0 : i32
    %c0_i32_0 = arith.constant 0 : i32
    return %arg0, %c0_i32 : i32, i32
  }
}

</mosaic_0001>

<llo_original>
// kernel: tpu_custom_call.1
$region0: #{tpu_custom_call.1}
  #allocation0 [shape = 'u32[]', space=smem, size = 0x4, offset = 0x4, fixed_abs, tag = 'smem constant byte address 0x4 - core index']
  #allocation1 [shape = 'u32[144,128]{1,0:T(1,128)}', space=vmem, size = 0x12000, scoped, tag = 'internal scratch']
  %s0 = inlined_call_operand.hbm [shape: f32[8,128], index: 0, kind: input, shape index: {}]
  %s1 = inlined_call_operand.hbm [shape: f32[128,128], index: 1, kind: input, shape index: {}]
  %s2 = inlined_call_operand.vmem [shape: f32[1,128], index: 2, kind: input, shape index: {}]
  %s3 = inlined_call_operand.hbm [shape: f32[8,128], index: 3, kind: output, shape index: {}]
  %s4 = sld [smem:[#allocation0]]
  $region30: #{tpu_custom_call.1} parent=0
    _
  %s6 = ssub.s32 1, %s4
  %s7 = scalar_select 0, %s6, %s4
  $region1: #{tpu_custom_call.1} parent=0
    #allocation2 [shape = 'u8[4096]{0}', space=vmem, size = 0x1000, scoped, tag = 'input window, operand 0, single buffered']
    #allocation3 [shape = 's32[1]{0}', space=sflag, size = 0x4, scoped, tag = 'scoped memory for tpu_custom_call.1']
    #allocation4 [shape = 's32[1]{0}', space=sflag, size = 0x4, scoped, tag = 'scoped memory for tpu_custom_call.1']
    #allocation5 [shape = 'u8[65536]{0}', space=vmem, size = 0x10000, scoped, tag = 'input window, operand 1, single buffered']
    #allocation6 [shape = 's32[1]{0}', space=sflag, size = 0x4, scoped, tag = 'scoped memory for tpu_custom_call.1']
    #allocation7 [shape = 'u8[4096]{0}', space=vmem, size = 0x1000, scoped, tag = 'output window, operand 0, single buffered']
    %8 = vsyncpa [#allocation3], 0
    %9 = vsyncpa [#allocation6], 0
    %10 = vsyncpa [#allocation4], 0
    // Predicated region
    $region2: #{tpu_custom_call.1} parent=1 // pred_check
      _
    $region3: #{tpu_custom_call.1} parent=1 // pred_check_branch
      %12 = sbr.rel (0) target = $region5
    $region4: #{tpu_custom_call.1} parent=1 // pred_region
      %s14 = ssub.s32 128, 128
      %15 = vsyncadd [#allocation3], %s14
      %s17 = sshll.u32 [#allocation2], 4
      %s18 = int_to_ptr.vmem [resolvable:$true] %s17
      %20 = dma.hbm_to_vmem [thread:$0]  %s0, 128, %s18, [#allocation3]
    $region5: #{tpu_custom_call.1} parent=1 // pred_fallthru
      _
    // Predicated region
    $region6: #{tpu_custom_call.1} parent=1 // pred_check
      _
    $region7: #{tpu_custom_call.1} parent=1 // pred_check_branch
      %22 = sbr.rel (0) target = $region9
    $region8: #{tpu_custom_call.1} parent=1 // pred_region
      %s24 = ssub.s32 2048, 2048
      %25 = vsyncadd [#allocation6], %s24
      %s26 = sshll.u32 [#allocation5], 4
      %s27 = int_to_ptr.vmem [resolvable:$true] %s26
      %32 = dma.hbm_to_vmem [thread:$0]  %s1, 2048, %s27, [#allocation6], 128, 128, 8
    $region9: #{tpu_custom_call.1} parent=1 // pred_fallthru
      _
    // Predicated region
    $region10: #{tpu_custom_call.1} parent=1 // pred_check
      _
    $region11: #{tpu_custom_call.1} parent=1 // pred_check_branch
      %34 = sbr.rel (0) target = $region13
    $region12: #{tpu_custom_call.1} parent=1 // pred_region
      _
    $region13: #{tpu_custom_call.1} parent=1 // pred_fallthru
      _
    // Predicated region
    $region14: #{tpu_custom_call.1} parent=1 // pred_check
      _
    $region15: #{tpu_custom_call.1} parent=1 // pred_check_branch
      %36 = sbr.rel (0) target = $region17
    $region16: #{tpu_custom_call.1} parent=1 // pred_region
      %37 = dma.done [#allocation3], 128
    $region17: #{tpu_custom_call.1} parent=1 // pred_fallthru
      _
    // Predicated region
    $region18: #{tpu_custom_call.1} parent=1 // pred_check
      _
    $region19: #{tpu_custom_call.1} parent=1 // pred_check_branch
      %39 = sbr.rel (0) target = $region21
    $region20: #{tpu_custom_call.1} parent=1 // pred_region
      %40 = dma.done [#allocation6], 2048
    $region21: #{tpu_custom_call.1} parent=1 // pred_fallthru
      _
    %v41 = vld [vmem:[#allocation2] sm:$0xff]
    %v42 = vld [vmem:[#allocation5] sm:$0xff]
    %v43 = vld [vmem:[#allocation5 + $0x8] sm:$0xff]
    %v44 = vld [vmem:[#allocation5 + $0x10] sm:$0xff]
    %v45 = vld [vmem:[#allocation5 + $0x18] sm:$0xff]
    %v46 = vld [vmem:[#allocation5 + $0x20] sm:$0xff]
    %v47 = vld [vmem:[#allocation5 + $0x28] sm:$0xff]
    %v48 = vld [vmem:[#allocation5 + $0x30] sm:$0xff]
    %v49 = vld [vmem:[#allocation5 + $0x38] sm:$0xff]
    %v50 = vld [vmem:[#allocation5 + $0x40] sm:$0xff]
    %v51 = vld [vmem:[#allocation5 + $0x48] sm:$0xff]
    %v52 = vld [vmem:[#allocation5 + $0x50] sm:$0xff]
    %v53 = vld [vmem:[#allocation5 + $0x58] sm:$0xff]
    %v54 = vld [vmem:[#allocation5 + $0x60] sm:$0xff]
    %v55 = vld [vmem:[#allocation5 + $0x68] sm:$0xff]
    %v56 = vld [vmem:[#allocation5 + $0x70] sm:$0xff]
    %v57 = vld [vmem:[#allocation5 + $0x78] sm:$0xff]
    %v58 = vld [vmem:[%s2] sm:$0x1]
    %v60 = vlaneseq
    %v61 = vshrl.u32 %v60, 7
    %v62 = vsub.s32 0, %v61
    %v63 = vrot.slane %v58, %v62
    %65 = vmatprep.subr.mxu0 0.0
    %66 = vmatpush1.msra.mxu0 %v57
    %67 = vmatprep.subr.mxu0 0.0
    %68 = vmatpush1.msra.mxu0 %v56
    %69 = vmatprep.subr.mxu0 0.0
    %70 = vmatpush1.msra.mxu0 %v55
    %71 = vmatprep.subr.mxu0 0.0
    %72 = vmatpush1.msra.mxu0 %v54
    %73 = vmatprep.subr.mxu0 0.0
    %74 = vmatpush1.msra.mxu0 %v53
    %75 = vmatprep.subr.mxu0 0.0
    %76 = vmatpush1.msra.mxu0 %v52
    %77 = vmatprep.subr.mxu0 0.0
    %78 = vmatpush1.msra.mxu0 %v51
    %79 = vmatprep.subr.mxu0 0.0
    %80 = vmatpush1.msra.mxu0 %v50
    %81 = vmatprep.subr.mxu0 0.0
    %82 = vmatpush1.msra.mxu0 %v49
    %83 = vmatprep.subr.mxu0 0.0
    %84 = vmatpush1.msra.mxu0 %v48
    %85 = vmatprep.subr.mxu0 0.0
    %86 = vmatpush1.msra.mxu0 %v47
    %87 = vmatprep.subr.mxu0 0.0
    %88 = vmatpush1.msra.mxu0 %v46
    %89 = vmatprep.subr.mxu0 0.0
    %90 = vmatpush1.msra.mxu0 %v45
    %91 = vmatprep.subr.mxu0 0.0
    %92 = vmatpush1.msra.mxu0 %v44
    %93 = vmatprep.subr.mxu0 0.0
    %94 = vmatpush1.msra.mxu0 %v43
    %95 = vmatprep.subr.mxu0 0.0
    %96 = vmatpush1.msra.mxu0 %v42
    %97 = vmatprep.subr.mxu0 0.0
    %98 = vmatpush2.msra.mxu0 0.0
    %99 = vmatprep.subr.mxu0 0.0
    %100 = vmatpush2.msra.mxu0 0.0
    %101 = vmatprep.subr.mxu0 0.0
    %102 = vmatpush2.msra.mxu0 0.0
    %103 = vmatprep.subr.mxu0 0.0
    %104 = vmatpush2.msra.mxu0 0.0
    %105 = vmatprep.subr.mxu0 0.0
    %106 = vmatpush2.msra.mxu0 0.0
    %107 = vmatprep.subr.mxu0 0.0
    %108 = vmatpush2.msra.mxu0 0.0
    %109 = vmatprep.subr.mxu0 0.0
    %110 = vmatpush2.msra.mxu0 0.0
    %111 = vmatprep.subr.mxu0 0.0
    %112 = vmatpush2.msra.mxu0 0.0
    %113 = vmatprep.subr.mxu0 0.0
    %114 = vmatpush2.msra.mxu0 0.0
    %115 = vmatprep.subr.mxu0 0.0
    %116 = vmatpush2.msra.mxu0 0.0
    %117 = vmatprep.subr.mxu0 0.0
    %118 = vmatpush2.msra.mxu0 0.0
    %119 = vmatprep.subr.mxu0 0.0
    %120 = vmatpush2.msra.mxu0 0.0
    %121 = vmatprep.subr.mxu0 0.0
    %122 = vmatpush2.msra.mxu0 0.0
    %123 = vmatprep.subr.mxu0 0.0
    %124 = vmatpush2.msra.mxu0 0.0
    %125 = vmatprep.subr.mxu0 0.0
    %126 = vmatpush2.msra.mxu0 0.0
    %127 = vmatprep.subr.mxu0 0.0
    %128 = vmatpush2.msra.mxu0 0.0
    %129 = vmatprep.mubr.f32.mxu0 0.0
    %130 = vmatmul.mubr.f32.gmra.mxu0 %v41
    %v131 = vpop.f32.mrf.mxu0
    %v132 = vadd.f32 %v63, %v131
    %v133 = vpop.f32.mrf.mxu0
    %134 = vdwg.mxu0
    %v135 = vxor.u32 %v132, 2147483648
    %v136 = vmul.f32 %v135, 1.442695
    %v137 = vpow.pop %v136
    %v138 = vadd.f32 %v137, 1.0
    %v139 = vrcp.pop %v138
    %v140 = vmul.f32 1.0, %v139
    %v141 = vmul.f32 %v140, %v132
    %142 = vst [vmem:[#allocation7] sm:$0xff] %v141
    // Predicated region
    $region22: #{tpu_custom_call.1} parent=1 // pred_check
      _
    $region23: #{tpu_custom_call.1} parent=1 // pred_check_branch
      %144 = sbr.rel (0) target = $region25
    $region24: #{tpu_custom_call.1} parent=1 // pred_region
      %s146 = ssub.s32 128, 128
      %147 = vsyncadd [#allocation4], %s146
      %s149 = sshll.u32 [#allocation7], 4
      %s150 = int_to_ptr.vmem [resolvable:$true] %s149
      %152 = dma.vmem_to_hbm [thread:$0]  %s150, 128, %s3, [#allocation4]
    $region25: #{tpu_custom_call.1} parent=1 // pred_fallthru
      _
    // Predicated region
    $region26: #{tpu_custom_call.1} parent=1 // pred_check
      _
    $region27: #{tpu_custom_call.1} parent=1 // pred_check_branch
      %154 = sbr.rel (0) target = $region29
    $region28: #{tpu_custom_call.1} parent=1 // pred_region
      %155 = dma.done [#allocation4], 128
    $region29: #{tpu_custom_call.1} parent=1 // pred_fallthru
      _
    %156 = vsyncpa [#allocation3], 1
    %157 = vsyncpa [#allocation6], 1
    %158 = vsyncpa [#allocation4], 1

</llo_original>
